<compile_context>
chip_gen: v7x
topology: tpu7x:2x2x1
jax: 0.10.0
libtpu: 0.0.40
codegen_flags: <defaults>
</compile_context>

<pallas_src>
import functools

import numpy as np
import jax
import jax.numpy as jnp
from jax import lax
from jax.experimental import pallas as pl
from jax.experimental.pallas import tpu as pltpu


def _round_up(x, m):
    return ((x + m - 1) // m) * m


def _pick_tile(dim_padded, cap, granule):
    """Largest multiple of `granule` that divides dim_padded and is <= cap."""
    cap = max(granule, min(cap, dim_padded))
    t = (cap // granule) * granule
    while t > granule and dim_padded % t != 0:
        t -= granule
    return t


def _normed_dense_kernel(x_ref, vt_ref, s_ref, b_ref, o_ref, *, nk):
    """Tiled y = (x @ v^T) * s + b, accumulating directly into the f32 output block.

    x_ref : (tm, tk) f32   (cast to bf16 in-kernel for the MXU)
    vt_ref: (tk, tn) bf16  (weight pre-transposed to (K, N) — natural MXU layout)
    s_ref : (1, tn)  f32   (weight-norm scale g * rsqrt(sum(v*v)) applied post-matmul)
    b_ref : (1, tn)  f32
    o_ref : (tm, tn) f32   (block index constant over k -> resident accumulator)
    """
    k = pl.program_id(2)
    part = jnp.dot(x_ref[...].astype(jnp.bfloat16), vt_ref[...],
                   preferred_element_type=jnp.float32)

    if nk == 1:
        o_ref[...] = part * s_ref[...] + b_ref[...]
    else:
        @pl.when(k == 0)
        def _():
            o_ref[...] = part

        @pl.when(jnp.logical_and(k > 0, k < nk - 1))
        def _():
            o_ref[...] += part

        @pl.when(k == nk - 1)
        def _():
            # Fuse final partial sum with the scale+bias epilogue (one RMW saved).
            o_ref[...] = (o_ref[...] + part) * s_ref[...] + b_ref[...]


@functools.partial(jax.jit,
                   static_argnames=("n_out", "tm_max", "tn_max", "tk_max"))
def normed_dense_forward(x2d, vt_pad, s_pad, b_pad, *, n_out,
                         tm_max=512, tn_max=1024, tk_max=512):
    """x2d: (B, K) f32, vt_pad: (Kp, Np) bf16, s_pad/b_pad: (1, Np) f32 -> (B, n_out) f32."""
    B, K = x2d.shape
    Kp, Np = vt_pad.shape

    # Pad x only to the layout boundary (M -> 16, K -> Kp which is a 128 multiple).
    Mp = _round_up(max(B, 1), 16)
    xp = x2d.astype(jnp.float32)
    if Mp != B or Kp != K:
        xp = jnp.pad(xp, ((0, Mp - B), (0, Kp - K)))

    # Largest tile <= cap that evenly divides the (128/16-rounded) dim.
    tm = _pick_tile(Mp, tm_max, 16)
    tn = _pick_tile(Np, tn_max, 128)
    tk = _pick_tile(Kp, tk_max, 128)

    # v7x has 2 TensorCores sharding the "parallel" grid dims: make sure there are
    # at least 2 blocks across (M, N) when N allows it.
    if (Mp // tm) * (Np // tn) < 2 and Np >= 256:
        tn = _pick_tile(Np, Np // 2, 128)

    grid = (Mp // tm, Np // tn, Kp // tk)

    # VMEM footprint: double-buffered x(f32) + vt(bf16) + out(f32) + s/b.
    vmem_need = 2 * (tm * tk * 4 + tk * tn * 2 + tm * tn * 4 + 2 * tn * 4)
    vmem_limit = int(min(max(vmem_need + (4 << 20), 32 << 20), 64 << 20))

    out = pl.pallas_call(
        functools.partial(_normed_dense_kernel, nk=grid[2]),
        out_shape=jax.ShapeDtypeStruct((Mp, Np), jnp.float32),
        grid_spec=pltpu.PrefetchScalarGridSpec(
            num_scalar_prefetch=0,
            grid=grid,
            in_specs=[
                pl.BlockSpec((tm, tk), lambda i, j, k: (i, k)),   # x  (f32)
                pl.BlockSpec((tk, tn), lambda i, j, k: (k, j)),   # v^T (bf16, (K,N))
                pl.BlockSpec((1, tn), lambda i, j, k: (0, j)),    # scale
                pl.BlockSpec((1, tn), lambda i, j, k: (0, j)),    # bias
            ],
            out_specs=pl.BlockSpec((tm, tn), lambda i, j, k: (i, j)),
        ),
        compiler_params=pltpu.CompilerParams(
            dimension_semantics=("parallel", "parallel", "arbitrary"),
            vmem_limit_bytes=vmem_limit,
        ),
        cost_estimate=pl.CostEstimate(
            flops=2 * Mp * Np * Kp,
            transcendentals=0,
            bytes_accessed=(4 * Mp * Kp * (Np // tn)      # x re-read per N block
                            + 2 * Kp * Np * (Mp // tm)    # weight re-read per M block
                            + 4 * Mp * Np + 8 * Np),
        ),
    )(xp, vt_pad, s_pad, b_pad)

    return out[:B, :n_out]


class AsFeatureMapPallas:
    """JAX/Pallas port of AsFeatureMap (forward pass)."""

    def __init__(self, input_shape, target_shape, key, weightnorm=True):
        self._input_shp = tuple(input_shape)
        self._target_shp = tuple(target_shape)
        if len(input_shape) < len(target_shape):
            self.in_features = int(np.prod(input_shape[1:]))
            self.out_features = int(np.prod(target_shape[1:]))
            # weight_v ~ N(0, 0.05) exactly as NormedDense.init_parameters re-draws it.
            # TODO(synk): for weightnorm=False the reference uses nn.Linear's default
            # (kaiming-uniform) init; we reuse the same N(0, 0.05) draw here.
            self.v = 0.05 * jax.random.normal(
                key, (self.out_features, self.in_features), dtype=jnp.float32)
            self.g = jnp.ones((self.out_features, 1), dtype=jnp.float32)
            self.b = jnp.zeros((1, self.out_features), dtype=jnp.float32)
            self.weightnorm = bool(weightnorm)
            self.initialized = not self.weightnorm  # plain Linear skips data-dep init
            # Cached, padded parameter tensors (rebuilt only when params change).
            self._vt_pad = None    # (Kp, Np) bf16, weight pre-transposed
            self._s_pad = None     # (1, Np) f32
            self._b_pad = None     # (1, Np) f32
            self._output_shp = self._target_shp
        else:
            self.v = None
            self._output_shp = self._input_shp

    # Call this if self.v / self.g / self.b are mutated externally.
    def invalidate_param_cache(self):
        self._vt_pad = None
        self._s_pad = None
        self._b_pad = None

    def _ensure_param_cache(self):
        Np = _round_up(self.out_features, 128)
        Kp = _round_up(self.in_features, 128)
        if self._vt_pad is None:
            v_pad = jnp.pad(self.v, ((0, Np - self.out_features),
                                     (0, Kp - self.in_features)))
            # One-time host-side transpose to the MXU's natural (K, N) layout.
            self._vt_pad = v_pad.T.astype(jnp.bfloat16)
        if self._s_pad is None:
            if self.weightnorm:
                s = (self.g.reshape(1, -1)
                     * lax.rsqrt(jnp.sum(self.v * self.v, axis=1)).reshape(1, -1))
            else:
                s = jnp.ones((1, self.out_features), dtype=jnp.float32)
            self._s_pad = jnp.pad(s.astype(jnp.float32),
                                  ((0, 0), (0, Np - self.out_features)))
        if self._b_pad is None:
            self._b_pad = jnp.pad(self.b.astype(jnp.float32),
                                  ((0, 0), (0, Np - self.out_features)))

    def _first_call(self, x2d, init_scale=0.01, eps=1e-8):
        # Data-dependent init (NormedDense.init_parameters). y0 uses g=1, b=0
        # (which is what the cached s/b hold at this point).
        y0 = normed_dense_forward(x2d, self._vt_pad, self._s_pad, self._b_pad,
                                  n_out=self.out_features)
        m_init = jnp.mean(y0, axis=0)                                    # (N,)
        # Unbiased var, matching torch.var; NaN for B == 1 (same as the reference).
        v_init = jnp.var(y0, axis=0, ddof=1)
        scale_init = init_scale / jnp.sqrt(v_init + eps)                 # (N,)
        self.g = self.g * scale_init.reshape(self.g.shape)
        self.b = self.b - (m_init * scale_init).reshape(self.b.shape)
        self._s_pad = None   # g changed -> rebuild lazily
        self._b_pad = None   # b changed -> rebuild lazily
        self.initialized = True
        # Reuse y0: algebraically identical to re-running the linear with new g, b.
        return (y0 - m_init[None, :]) * scale_init[None, :]

    def __call__(self, x):
        if self.v is None:
            return x
        B = x.shape[0]
        x2d = jnp.asarray(x, jnp.float32).reshape(B, -1)
        self._ensure_param_cache()
        if not self.initialized:
            y = self._first_call(x2d)
        else:
            y = normed_dense_forward(x2d, self._vt_pad, self._s_pad, self._b_pad,
                                     n_out=self.out_features)
        return y.reshape((B,) + self._target_shp[1:])

    @property
    def input_shape(self):
        return self._input_shp

    @property
    def output_shape(self):
        return self._output_shp


if __name__ == "__main__":
    key = jax.random.PRNGKey(0)
    k_x, k_w = jax.random.split(key)

    # input: (B, C, D) dense tensor, target: a (-1, C2, H, W) feature map
    input_shape = (2, 4, 16)            # B=2, C=4, D=16  -> in_features = 64
    target_shape = (-1, 8, 4, 4)        # out_features = 8*4*4 = 128

    x = jax.random.normal(k_x, input_shape, dtype=jnp.float32)

    module = AsFeatureMapPallas(input_shape, target_shape, key=k_w, weightnorm=True)

    # First call: data-dependent init path (single kernel invocation, y0 reused).
    out = jax.block_until_ready(module(x))
    assert out.shape == (2, 8, 4, 4), out.shape
    assert jnp.all(jnp.isfinite(out))

    # Second call: steady-state kernel path with cached padded bf16 weight / scale / bias.
    out2 = jax.block_until_ready(module(x))
    assert out2.shape == (2, 8, 4, 4), out2.shape
    assert jnp.all(jnp.isfinite(out2))

    # Same x through both paths must agree (algebraic identity, f32 epilogue).
    np.testing.assert_allclose(np.asarray(out), np.asarray(out2), rtol=1e-2, atol=1e-4)

    # Third call exercises the fully cached steady-state path again (jit cache hit).
    out3 = jax.block_until_ready(module(x))
    np.testing.assert_allclose(np.asarray(out2), np.asarray(out3), rtol=1e-6, atol=1e-6)

    print("KERNEL_OK")
</pallas_src>

<mosaic_0001>
module attributes {stable_mosaic.version = 11 : i64} {
  func.func @_normed_dense_kernel(%arg0: i32, %arg1: i32, %arg2: i32, %arg3: memref<16x128xf32, #tpu.memory_space<vmem>>, %arg4: memref<128x128xbf16, #tpu.memory_space<vmem>>, %arg5: memref<1x128xf32, #tpu.memory_space<vmem>>, %arg6: memref<1x128xf32, #tpu.memory_space<vmem>>, %arg7: memref<16x128xf32, #tpu.memory_space<vmem>>) attributes {dimension_semantics = [#tpu.dimension_semantics<parallel>, #tpu.dimension_semantics<parallel>, #tpu.dimension_semantics<arbitrary>], iteration_bounds = array<i64: 1, 1, 1>, scalar_prefetch = 0 : i64, scratch_operands = 0 : i64, tpu.core_type = #tpu.core_type<tc>, window_params = [{transform_indices = @transform_0, window_bounds = array<i64: 16, 128>}, {transform_indices = @transform_1, window_bounds = array<i64: 128, 128>}, {transform_indices = @transform_2, window_bounds = array<i64: 1, 128>}, {transform_indices = @transform_3, window_bounds = array<i64: 1, 128>}, {transform_indices = @transform_4, window_bounds = array<i64: 16, 128>}]} {
    %c0 = arith.constant 0 : index
    %c0_0 = arith.constant 0 : index
    %0 = vector.load %arg3[%c0, %c0_0] : memref<16x128xf32, #tpu.memory_space<vmem>>, vector<16x128xf32>
    %1 = arith.truncf %0 : vector<16x128xf32> to vector<16x128xbf16>
    %c0_1 = arith.constant 0 : index
    %c0_2 = arith.constant 0 : index
    %2 = vector.load %arg4[%c0_1, %c0_2] : memref<128x128xbf16, #tpu.memory_space<vmem>>, vector<128x128xbf16>
    %cst = arith.constant dense<0.000000e+00> : vector<16x128xf32>
    %3 = tpu.matmul %1, %2, %cst {dimension_numbers = #tpu.dot_dimension_numbers<[1], [0], [0], [1], [0, 0, 1, 1], [], []>} : vector<16x128xbf16>, vector<128x128xbf16>, vector<16x128xf32> -> vector<16x128xf32>
    %c0_3 = arith.constant 0 : index
    %c0_4 = arith.constant 0 : index
    %4 = vector.load %arg5[%c0_3, %c0_4] : memref<1x128xf32, #tpu.memory_space<vmem>>, vector<1x128xf32>
    %5 = vector.broadcast %4 : vector<1x128xf32> to vector<16x128xf32>
    %6 = arith.mulf %3, %5 : vector<16x128xf32>
    %c0_5 = arith.constant 0 : index
    %c0_6 = arith.constant 0 : index
    %7 = vector.load %arg6[%c0_5, %c0_6] : memref<1x128xf32, #tpu.memory_space<vmem>>, vector<1x128xf32>
    %8 = vector.broadcast %7 : vector<1x128xf32> to vector<16x128xf32>
    %9 = arith.addf %6, %8 : vector<16x128xf32>
    %c0_7 = arith.constant 0 : index
    %c0_8 = arith.constant 0 : index
    %10 = vector.load %arg7[%c0_7, %c0_8] : memref<16x128xf32, #tpu.memory_space<vmem>>, vector<16x128xf32>
    tpu.vector_store %arg7[%c0_7, %c0_8], %9 {strides = array<i32>} : memref<16x128xf32, #tpu.memory_space<vmem>>, vector<16x128xf32>,
    return
  }
  func.func @transform_0(%arg0: i32, %arg1: i32, %arg2: i32) -> (i32, i32) {
    %c0_i32 = arith.constant 0 : i32
    return %arg0, %arg2 : i32, i32
  }
  func.func @transform_1(%arg0: i32, %arg1: i32, %arg2: i32) -> (i32, i32) {
    %c0_i32 = arith.constant 0 : i32
    return %arg2, %arg1 : i32, i32
  }
  func.func @transform_2(%arg0: i32, %arg1: i32, %arg2: i32) -> (i32, i32) {
    %c0_i32 = arith.constant 0 : i32
    %c0_i32_0 = arith.constant 0 : i32
    return %c0_i32, %arg1 : i32, i32
  }
  func.func @transform_3(%arg0: i32, %arg1: i32, %arg2: i32) -> (i32, i32) {
    %c0_i32 = arith.constant 0 : i32
    %c0_i32_0 = arith.constant 0 : i32
    return %c0_i32, %arg1 : i32, i32
  }
  func.func @transform_4(%arg0: i32, %arg1: i32, %arg2: i32) -> (i32, i32) {
    %c0_i32 = arith.constant 0 : i32
    return %arg0, %arg1 : i32, i32
  }
}

</mosaic_0001>

<llo_original>
// kernel: normed_dense_forward.1
$region0: #{normed_dense_forward.1}
  #allocation0 [shape = 'u32[]', space=smem, size = 0x4, offset = 0x4, fixed_abs, tag = 'smem constant byte address 0x4 - core index']
  #allocation1 [shape = 'u32[144,128]{1,0:T(1,128)}', space=vmem, size = 0x12000, scoped, tag = 'internal scratch']
  %s0 = inlined_call_operand.vmem [shape: f32[16,128], index: 0, kind: input, shape index: {}]
  %s1 = inlined_call_operand.hbm [shape: bf16[128,128], index: 1, kind: input, shape index: {}]
  %s2 = inlined_call_operand.vmem [shape: f32[1,128], index: 2, kind: input, shape index: {}]
  %s3 = inlined_call_operand.vmem [shape: f32[1,128], index: 3, kind: input, shape index: {}]
  %s4 = inlined_call_operand.vmem [shape: f32[16,128], index: 4, kind: output, shape index: {}]
  %s5 = sld [smem:[#allocation0]]
  $region30: #{normed_dense_forward.1} parent=0
    _
  %s7 = ssub.s32 1, %s5
  %s8 = scalar_select 0, %s7, %s5
  $region1: #{normed_dense_forward.1} parent=0
    #allocation2 [shape = 'u8[32768]{0}', space=vmem, size = 0x8000, scoped, tag = 'input window, operand 1, single buffered']
    #allocation3 [shape = 's32[1]{0}', space=sflag, size = 0x4, scoped, tag = 'scoped memory for normed_dense_forward.1']
    %9 = vsyncpa [#allocation3], 0
    // Predicated region
    $region2: #{normed_dense_forward.1} parent=1 // pred_check
      _
    $region3: #{normed_dense_forward.1} parent=1 // pred_check_branch
      %11 = sbr.rel (0) target = $region5
    $region4: #{normed_dense_forward.1} parent=1 // pred_region
      _
    $region5: #{normed_dense_forward.1} parent=1 // pred_fallthru
      _
    // Predicated region
    $region6: #{normed_dense_forward.1} parent=1 // pred_check
      _
    $region7: #{normed_dense_forward.1} parent=1 // pred_check_branch
      %13 = sbr.rel (0) target = $region9
    $region8: #{normed_dense_forward.1} parent=1 // pred_region
      %s15 = ssub.s32 1024, 1024
      %16 = vsyncadd [#allocation3], %s15
      %s17 = sshll.u32 [#allocation2], 4
      %s18 = int_to_ptr.vmem [resolvable:$true] %s17
      %23 = dma.hbm_to_vmem [thread:$0]  %s1, 1024, %s18, [#allocation3], 64, 64, 4
    $region9: #{normed_dense_forward.1} parent=1 // pred_fallthru
      _
    // Predicated region
    $region10: #{normed_dense_forward.1} parent=1 // pred_check
      _
    $region11: #{normed_dense_forward.1} parent=1 // pred_check_branch
      %25 = sbr.rel (0) target = $region13
    $region12: #{normed_dense_forward.1} parent=1 // pred_region
      _
    $region13: #{normed_dense_forward.1} parent=1 // pred_fallthru
      _
    // Predicated region
    $region14: #{normed_dense_forward.1} parent=1 // pred_check
      _
    $region15: #{normed_dense_forward.1} parent=1 // pred_check_branch
      %27 = sbr.rel (0) target = $region17
    $region16: #{normed_dense_forward.1} parent=1 // pred_region
      _
    $region17: #{normed_dense_forward.1} parent=1 // pred_fallthru
      _
    // Predicated region
    $region18: #{normed_dense_forward.1} parent=1 // pred_check
      _
    $region19: #{normed_dense_forward.1} parent=1 // pred_check_branch
      %29 = sbr.rel (0) target = $region21
    $region20: #{normed_dense_forward.1} parent=1 // pred_region
      %30 = dma.done [#allocation3], 1024
    $region21: #{normed_dense_forward.1} parent=1 // pred_fallthru
      _
    %v32 = vld [vmem:[%s0] sm:$0xff]
    %v33 = vld [vmem:[%s0 + $0x8] sm:$0xff]
    %v34 = vpack.c.bf16 %v33, %v32
    %v35 = vld [vmem:[#allocation2] sm:$0xf]
    %v36 = vld [vmem:[#allocation2 + $0x4] sm:$0xf]
    %v37 = vld [vmem:[#allocation2 + $0x8] sm:$0xf]
    %v38 = vld [vmem:[#allocation2 + $0xc] sm:$0xf]
    %v39 = vld [vmem:[#allocation2 + $0x10] sm:$0xf]
    %v40 = vld [vmem:[#allocation2 + $0x14] sm:$0xf]
    %v41 = vld [vmem:[#allocation2 + $0x18] sm:$0xf]
    %v42 = vld [vmem:[#allocation2 + $0x1c] sm:$0xf]
    %v43 = vld [vmem:[#allocation2 + $0x20] sm:$0xf]
    %v44 = vld [vmem:[#allocation2 + $0x24] sm:$0xf]
    %v45 = vld [vmem:[#allocation2 + $0x28] sm:$0xf]
    %v46 = vld [vmem:[#allocation2 + $0x2c] sm:$0xf]
    %v47 = vld [vmem:[#allocation2 + $0x30] sm:$0xf]
    %v48 = vld [vmem:[#allocation2 + $0x34] sm:$0xf]
    %v49 = vld [vmem:[#allocation2 + $0x38] sm:$0xf]
    %v50 = vld [vmem:[#allocation2 + $0x3c] sm:$0xf]
    %v67 = vunpack.c.l.b16 %v35
    %v68 = vunpack.c.l.b16 %v36
    %v69 = vunpack.c.l.b16 %v37
    %v70 = vunpack.c.l.b16 %v38
    %v71 = vunpack.c.l.b16 %v39
    %v72 = vunpack.c.l.b16 %v40
    %v73 = vunpack.c.l.b16 %v41
    %v74 = vunpack.c.l.b16 %v42
    %v75 = vunpack.c.l.b16 %v43
    %v76 = vunpack.c.l.b16 %v44
    %v77 = vunpack.c.l.b16 %v45
    %v78 = vunpack.c.l.b16 %v46
    %v79 = vunpack.c.l.b16 %v47
    %v80 = vunpack.c.l.b16 %v48
    %v81 = vunpack.c.l.b16 %v49
    %v82 = vunpack.c.l.b16 %v50
    %v83 = vpack.c.b16 %v68, %v67
    %v84 = vpack.c.b16 %v70, %v69
    %v85 = vpack.c.b16 %v72, %v71
    %v86 = vpack.c.b16 %v74, %v73
    %v87 = vpack.c.b16 %v76, %v75
    %v88 = vpack.c.b16 %v78, %v77
    %v89 = vpack.c.b16 %v80, %v79
    %v90 = vpack.c.b16 %v82, %v81
    %99 = vmatprep.subr.bf16.mxu0 0
    %100 = vmatpush1.bf16.msra.mxu0 %v83
    %101 = vmatprep.subr.bf16.mxu0 0
    %102 = vmatpush1.bf16.msra.mxu0 %v84
    %103 = vmatprep.subr.bf16.mxu0 0
    %104 = vmatpush1.bf16.msra.mxu0 %v85
    %105 = vmatprep.subr.bf16.mxu0 0
    %106 = vmatpush1.bf16.msra.mxu0 %v86
    %107 = vmatprep.subr.bf16.mxu0 0
    %108 = vmatpush1.bf16.msra.mxu0 %v87
    %109 = vmatprep.subr.bf16.mxu0 0
    %110 = vmatpush1.bf16.msra.mxu0 %v88
    %111 = vmatprep.subr.bf16.mxu0 0
    %112 = vmatpush1.bf16.msra.mxu0 %v89
    %113 = vmatprep.subr.bf16.mxu0 0
    %114 = vmatpush1.bf16.msra.mxu0 %v90
    %115 = vmatprep.subr.bf16.mxu0 0
    %116 = vmatpush1.bf16.msra.mxu0 0
    %117 = vmatprep.subr.bf16.mxu0 0
    %118 = vmatpush1.bf16.msra.mxu0 0
    %119 = vmatprep.subr.bf16.mxu0 0
    %120 = vmatpush1.bf16.msra.mxu0 0
    %121 = vmatprep.subr.bf16.mxu0 0
    %122 = vmatpush1.bf16.msra.mxu0 0
    %123 = vmatprep.subr.bf16.mxu0 0
    %124 = vmatpush1.bf16.msra.mxu0 0
    %125 = vmatprep.subr.bf16.mxu0 0
    %126 = vmatpush1.bf16.msra.mxu0 0
    %127 = vmatprep.subr.bf16.mxu0 0
    %128 = vmatpush1.bf16.msra.mxu0 0
    %129 = vmatprep.subr.bf16.mxu0 0
    %130 = vmatpush1.bf16.msra.mxu0 0
    %131 = vmatprep.mubr.bf16.mxu0 0
    %132 = vmatmul.mubr.bf16.gmra.mrb[0].mxu0 %v34
    %v133 = vpop.f32.mrb[0].mxu0
    %v134 = vadd.f32 0.0, %v133
    %v135 = vpop.f32.mrb[0].mxu0
    %v136 = vpop.f32.mrb[0].mxu0
    %v137 = vadd.f32 0.0, %v136
    %v138 = vpop.f32.mrb[0].mxu0
    %139 = vdwg.mxu0
    %v140 = vld [vmem:[%s2] sm:$0x1]
    %v142 = vlaneseq
    %v143 = vshrl.u32 %v142, 7
    %v144 = vsub.s32 0, %v143
    %v145 = vrot.slane %v140, %v144
    %v147 = vmul.f32 %v134, %v145
    %v148 = vmul.f32 %v137, %v145
    %v149 = vld [vmem:[%s3] sm:$0x1]
    %v151 = vlaneseq
    %v152 = vshrl.u32 %v151, 7
    %v153 = vsub.s32 0, %v152
    %v154 = vrot.slane %v149, %v153
    %v156 = vadd.f32 %v147, %v154
    %v157 = vadd.f32 %v148, %v154
    %158 = vst [vmem:[%s4] sm:$0xff] %v156
    %159 = vst [vmem:[%s4 + $0x8] sm:$0xff] %v157
    // Predicated region
    $region22: #{normed_dense_forward.1} parent=1 // pred_check
      _
    $region23: #{normed_dense_forward.1} parent=1 // pred_check_branch
      %161 = sbr.rel (0) target = $region25
    $region24: #{normed_dense_forward.1} parent=1 // pred_region
      _
    $region25: #{normed_dense_forward.1} parent=1 // pred_fallthru
      _
    // Predicated region
    $region26: #{normed_dense_forward.1} parent=1 // pred_check
      _
    $region27: #{normed_dense_forward.1} parent=1 // pred_check_branch
      %163 = sbr.rel (0) target = $region29
    $region28: #{normed_dense_forward.1} parent=1 // pred_region
      _
    $region29: #{normed_dense_forward.1} parent=1 // pred_fallthru
      _
    %164 = vsyncpa [#allocation3], 1

</llo_original>
